<compile_context>
chip_gen: v5e
topology: v5e:2x2
jax: 0.10.0
libtpu: 0.0.40
codegen_flags: <defaults>
</compile_context>

<pallas_src>
import functools

import jax
import jax.numpy as jnp
from jax.experimental import pallas as pl
from jax.experimental.pallas import tpu as pltpu


# ---------------------------------------------------------------------------
# Kernels
# ---------------------------------------------------------------------------
def _fused_kernel(x_ref, ws_ref, bs_ref, wv_ref, bv_ref, bf_ref, o_ref,
                  *, c2, inv_hw):
    """Single-pass path: one stacked MXU pass over x (HW fits one block)."""
    x = x_ref[0]                                              # (C, HW) f32
    xb = x.astype(jnp.bfloat16)

    # One MXU pass: stacked [Wq; Wf@Wk] @ x + stacked bias.
    res = jnp.dot(ws_ref[...], xb,
                  preferred_element_type=jnp.float32) + bs_ref[...]  # (C2+C, HW)
    qf = res[:c2]                                             # (C2, HW) q-branch
    y0 = res[c2:]                                             # (C, HW)  out-branch

    # adaptive avg + max pool over spatial (lane) axis, softmax over channels
    qp = (jnp.sum(qf, axis=1, keepdims=True) * inv_hw
          + jnp.max(qf, axis=1, keepdims=True))               # (C2, 1)
    qp = qp - jnp.max(qp, axis=0, keepdims=True)
    e = jnp.exp(qp)
    q = e / jnp.sum(e, axis=0, keepdims=True)                 # (C2, 1)

    # AV = q.v with node_v folded:  av = (q^T Wv) @ x + q^T bv
    row = jnp.sum(q * wv_ref[...], axis=0, keepdims=True)     # (1, C) f32
    qb = jnp.sum(q * bv_ref[...], keepdims=True)              # (1, 1)
    av = jnp.dot(row.astype(jnp.bfloat16), xb,
                 preferred_element_type=jnp.float32) + qb     # (1, HW)
    weight = jax.nn.sigmoid(av)

    # y = weight*(Wck@x + bck) + bf ; residual + ReLU
    o_ref[0] = jnp.maximum(weight * y0 + bf_ref[...] + x, 0.0)


def _pool_kernel(x_ref, wq_ref, bq_ref, sum_ref, max_ref):
    """Tiled path, pass 1: accumulate sum/max of (Wq@x + bq) over HW tiles."""
    @pl.when(pl.program_id(1) == 0)
    def _():
        sum_ref[...] = jnp.zeros_like(sum_ref)
        max_ref[...] = jnp.full_like(max_ref, -jnp.inf)

    xb = x_ref[0].astype(jnp.bfloat16)                        # (C, THW)
    qf = jnp.dot(wq_ref[...], xb,
                 preferred_element_type=jnp.float32) + bq_ref[...]   # (C2, THW)
    sum_ref[0] = sum_ref[0] + jnp.sum(qf, axis=1, keepdims=True)
    max_ref[0] = jnp.maximum(max_ref[0], jnp.max(qf, axis=1, keepdims=True))


def _main_kernel(qsum_ref, qmax_ref, x_ref, wv_ref, bv_ref, wck_ref, bck_ref,
                 bf_ref, o_ref, *, inv_hw):
    """Tiled path, pass 2: gated fused matmul + residual + ReLU per HW tile."""
    x = x_ref[0]                                              # (C, THW) f32
    xb = x.astype(jnp.bfloat16)

    # pooled q -> softmax over channels (tiny; recomputed per tile)
    qp = qsum_ref[0] * inv_hw + qmax_ref[0]                   # (C2, 1)
    qp = qp - jnp.max(qp, axis=0, keepdims=True)
    e = jnp.exp(qp)
    q = e / jnp.sum(e, axis=0, keepdims=True)

    row = jnp.sum(q * wv_ref[...], axis=0, keepdims=True)     # (1, C) f32
    qb = jnp.sum(q * bv_ref[...], keepdims=True)              # (1, 1)
    av = jnp.dot(row.astype(jnp.bfloat16), xb,
                 preferred_element_type=jnp.float32) + qb     # (1, THW)
    weight = jax.nn.sigmoid(av)

    y0 = jnp.dot(wck_ref[...], xb,
                 preferred_element_type=jnp.float32) + bck_ref[...]  # (C, THW)
    o_ref[0] = jnp.maximum(weight * y0 + bf_ref[...] + x, 0.0)


# ---------------------------------------------------------------------------
# Wrapper
# ---------------------------------------------------------------------------
def _pick_hw_tile(hw, target):
    if hw <= target:
        return hw
    for t in (target, 2048, 1024, 512, 256, 128):
        if t <= target and t % 128 == 0 and hw % t == 0:
            return t
    return hw   # no aligned divisor: fall back to full-HW blocks


def _vmem_limit(bytes_needed):
    # explicit scoped-VMEM limit: >= estimated need, clamped to a value that
    # is safe on every generation (v7x physical VMEM = 64 MiB).
    return int(min(max(bytes_needed, 32 << 20), 64 << 20))


def spatial_gcn1_pallas(x_nchw, p, *, hw_tile_target=1024):
    b, c, h, w = x_nchw.shape
    c2 = c // 2
    hw = h * w

    # NCHW -> (B, C, HW): pure reshape, no HBM transpose pass.
    x = x_nchw.reshape(b, c, hw).astype(jnp.float32)

    # ---- host-side parameter fusion (f32, exact) --------------------------
    sout, shout = p["scale_out"], p["shift_out"]              # (C,)
    swg, shwg = p["scale_wg"], p["shift_wg"]                  # (C2,)
    # y = sout*(Wout @ (swg*(Wwg@avk) + shwg) + bout) + shout
    wf = (sout[:, None] * p["wout"]) @ (swg[:, None] * p["wwg"])    # (C, C2)
    bf_vec = sout * (p["wout"] @ shwg + p["bout"]) + shout          # (C,)
    # weight commutes with the matmul -> fold node_k in as well.
    wck = wf @ p["wk"]                                              # (C, C)
    bck = wf @ p["bk"]                                              # (C,)

    wq = p["wq"].astype(jnp.bfloat16)                         # (C2, C)
    wv = p["wv"].astype(jnp.bfloat16)                         # (C2, C)
    wck_b = wck.astype(jnp.bfloat16)                          # (C, C)
    bq = p["bq"].astype(jnp.float32)                          # (C2,)
    bv = p["bv"].reshape(c2, 1).astype(jnp.float32)
    bck_v = bck.astype(jnp.float32)                           # (C,)
    bfv = bf_vec.reshape(c, 1).astype(jnp.float32)

    thw = _pick_hw_tile(hw, hw_tile_target)
    nt = hw // thw
    f32, bf16 = 4, 2

    if nt == 1:
        # ------------------ fused single-pass path -------------------------
        ws = jnp.concatenate([wq, wck_b], axis=0)             # (C2+C, C) bf16
        bs = jnp.concatenate([bq, bck_v]).reshape(c2 + c, 1)  # (C2+C, 1) f32

        full = lambda shape: pl.BlockSpec(shape, lambda bi: (0,) * len(shape))
        need = (2 * (2 * c * hw * f32 + (c2 + 2 * c) * c * bf16)
                + (c2 + 2 * c) * hw * f32 + (8 << 20))
        out = pl.pallas_call(
            functools.partial(_fused_kernel, c2=c2, inv_hw=1.0 / hw),
            out_shape=jax.ShapeDtypeStruct((b, c, hw), jnp.float32),
            grid_spec=pltpu.PrefetchScalarGridSpec(
                num_scalar_prefetch=0,
                grid=(b,),
                in_specs=[
                    pl.BlockSpec((1, c, hw), lambda bi: (bi, 0, 0)),
                    full((c2 + c, c)), full((c2 + c, 1)),
                    full((c2, c)), full((c2, 1)),
                    full((c, 1)),
                ],
                out_specs=pl.BlockSpec((1, c, hw), lambda bi: (bi, 0, 0)),
            ),
            compiler_params=pltpu.CompilerParams(
                dimension_semantics=("parallel",),
                vmem_limit_bytes=_vmem_limit(need)),
        )(x, ws, bs, wv, bv, bfv)
        return out.reshape(b, c, h, w)

    # ---------------------- tiled path (HW grid axis) ----------------------
    full2 = lambda shape: pl.BlockSpec(shape, lambda bi, ti: (0,) * len(shape))
    bq2 = bq.reshape(c2, 1)
    bck2 = bck_v.reshape(c, 1)

    # pass 1: pooled-q statistics (accumulator output, hw axis "arbitrary")
    need1 = 2 * (c * thw * f32 + c2 * c * bf16) + c2 * thw * f32 + (8 << 20)
    qsum, qmax = pl.pallas_call(
        _pool_kernel,
        out_shape=(jax.ShapeDtypeStruct((b, c2, 1), jnp.float32),
                   jax.ShapeDtypeStruct((b, c2, 1), jnp.float32)),
        grid_spec=pltpu.PrefetchScalarGridSpec(
            num_scalar_prefetch=0,
            grid=(b, nt),
            in_specs=[
                pl.BlockSpec((1, c, thw), lambda bi, ti: (bi, 0, ti)),
                full2((c2, c)), full2((c2, 1)),
            ],
            out_specs=[
                pl.BlockSpec((1, c2, 1), lambda bi, ti: (bi, 0, 0)),
                pl.BlockSpec((1, c2, 1), lambda bi, ti: (bi, 0, 0)),
            ],
        ),
        compiler_params=pltpu.CompilerParams(
            dimension_semantics=("parallel", "arbitrary"),
            vmem_limit_bytes=_vmem_limit(need1)),
    )(x, wq, bq2)

    # pass 2: gated fused matmul + residual + ReLU, both axes "parallel"
    need2 = (2 * (2 * c * thw * f32 + (c + c2) * c * bf16)
             + (c2 + 2 * c) * thw * f32 + (8 << 20))
    out = pl.pallas_call(
        functools.partial(_main_kernel, inv_hw=1.0 / hw),
        out_shape=jax.ShapeDtypeStruct((b, c, hw), jnp.float32),
        grid_spec=pltpu.PrefetchScalarGridSpec(
            num_scalar_prefetch=0,
            grid=(b, nt),
            in_specs=[
                pl.BlockSpec((1, c2, 1), lambda bi, ti: (bi, 0, 0)),
                pl.BlockSpec((1, c2, 1), lambda bi, ti: (bi, 0, 0)),
                pl.BlockSpec((1, c, thw), lambda bi, ti: (bi, 0, ti)),
                full2((c2, c)), full2((c2, 1)),
                full2((c, c)), full2((c, 1)), full2((c, 1)),
            ],
            out_specs=pl.BlockSpec((1, c, thw), lambda bi, ti: (bi, 0, ti)),
        ),
        compiler_params=pltpu.CompilerParams(
            dimension_semantics=("parallel", "parallel"),
            vmem_limit_bytes=_vmem_limit(need2)),
    )(qsum, qmax, x, wv, bv, wck_b, bck2, bfv)

    return out.reshape(b, c, h, w)


# ---------------------------------------------------------------------------
# Pure-JAX reference + synthetic params
# ---------------------------------------------------------------------------
def ref_forward(x, p):
    """Pure-JAX reference mirroring the PyTorch forward (NCHW, eval-mode BN)."""
    b, c, h, w = x.shape
    c2 = c // 2

    def conv1x1(z, wgt, bias=None):
        y = jnp.einsum("bchw,oc->bohw", z, wgt)
        if bias is not None:
            y = y + bias[None, :, None, None]
        return y

    v = conv1x1(x, p["wv"], p["bv"]).reshape(b, c2, -1)
    q = conv1x1(x, p["wq"], p["bq"])
    q1 = jnp.mean(q, axis=(2, 3), keepdims=True)
    q2 = jnp.max(q, axis=(2, 3), keepdims=True)
    q = (q1 + q2).transpose(0, 2, 3, 1).reshape(b, 1, c2)
    q = jax.nn.softmax(q, axis=-1)
    k = conv1x1(x, p["wk"], p["bk"]).reshape(b, c2, -1)
    av = jnp.matmul(q, v)                      # (b, 1, hw)
    weight = jax.nn.sigmoid(av)
    av = weight * k                            # (b, c2, hw)
    avw = jnp.einsum("oc,bcl->bol", p["wwg"], av)
    avw = avw * p["scale_wg"][None, :, None] + p["shift_wg"][None, :, None]
    avw = avw.reshape(b, c2, h, w)
    y = conv1x1(avw, p["wout"], p["bout"])
    y = y * p["scale_out"][None, :, None, None] + p["shift_out"][None, :, None, None]
    return jnp.maximum(y + x, 0.0)


def make_params(key, channel):
    c = channel
    c2 = c // 2
    eps = 1e-5
    ks = jax.random.split(key, 16)
    n = lambda k, shape: (0.1 * jax.random.normal(k, shape)).astype(jnp.float32)

    p = {
        "wv": n(ks[0], (c2, c)), "bv": n(ks[1], (c2,)),
        "wq": n(ks[2], (c2, c)), "bq": n(ks[3], (c2,)),
        "wk": n(ks[4], (c2, c)), "bk": n(ks[5], (c2,)),
        "wwg": n(ks[6], (c2, c2)),
        "wout": n(ks[7], (c, c2)), "bout": n(ks[8], (c,)),
    }
    # BatchNorm1d(c2): deterministic running stats + affine (eval mode), folded
    g_wg = 1.0 + n(ks[9], (c2,)); b_wg = n(ks[10], (c2,))
    m_wg = n(ks[11], (c2,)); v_wg = 0.5 + jnp.abs(n(ks[12], (c2,)))
    p["scale_wg"] = g_wg / jnp.sqrt(v_wg + eps)
    p["shift_wg"] = b_wg - m_wg * p["scale_wg"]
    # BatchNorm2d(c): same treatment
    g_o = 1.0 + n(ks[13], (c,)); b_o = n(ks[14], (c,))
    m_o = n(ks[15], (c,)); v_o = 0.5 + jnp.abs(0.1 * jnp.ones((c,), jnp.float32))
    p["scale_out"] = g_o / jnp.sqrt(v_o + eps)
    p["shift_out"] = b_o - m_o * p["scale_out"]
    return p


if __name__ == "__main__":
    key = jax.random.PRNGKey(0)
    kx, kp = jax.random.split(key)

    B, C, H, W = 2, 4, 16, 16
    x = jax.random.normal(kx, (B, C, H, W), dtype=jnp.float32)
    params = make_params(kp, C)

    ref = jax.block_until_ready(ref_forward(x, params))

    # fused single-pass path (HW fits one block)
    out = jax.block_until_ready(spatial_gcn1_pallas(x, params))
    assert out.shape == (B, C, H, W), out.shape
    # bf16 matmul operands -> loosened tolerance (f32 accumulation/elementwise)
    assert jnp.allclose(out, ref, atol=2e-2, rtol=2e-2), float(
        jnp.max(jnp.abs(out - ref)))

    # tiled path (HW grid axis + two-pass pooling), forced via a 128-wide tile
    out_t = jax.block_until_ready(
        spatial_gcn1_pallas(x, params, hw_tile_target=128))
    assert jnp.allclose(out_t, ref, atol=2e-2, rtol=2e-2), float(
        jnp.max(jnp.abs(out_t - ref)))

    print("KERNEL_OK")
</pallas_src>

<mosaic_0001>
module attributes {stable_mosaic.version = 11 : i64} {
  func.func @_fused_kernel(%arg0: i32, %arg1: memref<1x4x256xf32, #tpu.memory_space<vmem>>, %arg2: memref<6x4xbf16, #tpu.memory_space<vmem>>, %arg3: memref<6x1xf32, #tpu.memory_space<vmem>>, %arg4: memref<2x4xbf16, #tpu.memory_space<vmem>>, %arg5: memref<2x1xf32, #tpu.memory_space<vmem>>, %arg6: memref<4x1xf32, #tpu.memory_space<vmem>>, %arg7: memref<1x4x256xf32, #tpu.memory_space<vmem>>) attributes {dimension_semantics = [#tpu.dimension_semantics<parallel>], iteration_bounds = array<i64: 2>, scalar_prefetch = 0 : i64, scratch_operands = 0 : i64, tpu.core_type = #tpu.core_type<tc>, window_params = [{transform_indices = @transform_0, window_bounds = array<i64: 1, 4, 256>}, {pipeline_mode = #tpu.pipeline_mode<synchronous>, transform_indices = @transform_1, window_bounds = array<i64: 6, 4>}, {pipeline_mode = #tpu.pipeline_mode<synchronous>, transform_indices = @transform_2, window_bounds = array<i64: 6, 1>}, {pipeline_mode = #tpu.pipeline_mode<synchronous>, transform_indices = @transform_3, window_bounds = array<i64: 2, 4>}, {pipeline_mode = #tpu.pipeline_mode<synchronous>, transform_indices = @transform_4, window_bounds = array<i64: 2, 1>}, {pipeline_mode = #tpu.pipeline_mode<synchronous>, transform_indices = @transform_5, window_bounds = array<i64: 4, 1>}, {transform_indices = @transform_6, window_bounds = array<i64: 1, 4, 256>}]} {
    %c0 = arith.constant 0 : index
    %c0_0 = arith.constant 0 : index
    %c0_1 = arith.constant 0 : index
    %0 = vector.load %arg1[%c0, %c0_0, %c0_1] : memref<1x4x256xf32, #tpu.memory_space<vmem>>, vector<1x4x256xf32>
    %1 = vector.shape_cast %0 : vector<1x4x256xf32> to vector<4x256xf32>
    %2 = arith.truncf %1 : vector<4x256xf32> to vector<4x256xbf16>
    %c0_2 = arith.constant 0 : index
    %c0_3 = arith.constant 0 : index
    %3 = vector.load %arg2[%c0_2, %c0_3] : memref<6x4xbf16, #tpu.memory_space<vmem>>, vector<6x4xbf16>
    %cst = arith.constant dense<0.000000e+00> : vector<6x256xf32>
    %4 = tpu.matmul %3, %2, %cst {dimension_numbers = #tpu.dot_dimension_numbers<[1], [0], [0], [1], [0, 0, 1, 1], [], []>} : vector<6x4xbf16>, vector<4x256xbf16>, vector<6x256xf32> -> vector<6x256xf32>
    %c0_4 = arith.constant 0 : index
    %c0_5 = arith.constant 0 : index
    %5 = vector.load %arg3[%c0_4, %c0_5] : memref<6x1xf32, #tpu.memory_space<vmem>>, vector<6x1xf32>
    %6 = vector.broadcast %5 : vector<6x1xf32> to vector<6x256xf32>
    %7 = arith.addf %4, %6 : vector<6x256xf32>
    %8 = vector.extract_strided_slice %7 {offsets = [0, 0], sizes = [2, 256], strides = [1, 1]} : vector<6x256xf32> to vector<2x256xf32>
    %9 = vector.extract_strided_slice %7 {offsets = [2, 0], sizes = [4, 256], strides = [1, 1]} : vector<6x256xf32> to vector<4x256xf32>
    %cst_6 = arith.constant dense<0.000000e+00> : vector<2xf32>
    %10 = vector.multi_reduction <add>, %8, %cst_6 [1] : vector<2x256xf32> to vector<2xf32>
    %11 = vector.shape_cast %10 : vector<2xf32> to vector<2x1xf32>
    %cst_7 = arith.constant 3.906250e-03 : f32
    %12 = vector.broadcast %cst_7 : f32 to vector<2x1xf32>
    %13 = arith.mulf %11, %12 : vector<2x1xf32>
    %cst_8 = arith.constant dense<0xFF800000> : vector<2xf32>
    %14 = vector.multi_reduction <maximumf>, %8, %cst_8 [1] : vector<2x256xf32> to vector<2xf32>
    %15 = vector.shape_cast %14 : vector<2xf32> to vector<2x1xf32>
    %16 = arith.addf %13, %15 : vector<2x1xf32>
    %cst_9 = arith.constant dense<0xFF800000> : vector<1xf32>
    %17 = vector.multi_reduction <maximumf>, %16, %cst_9 [0] : vector<2x1xf32> to vector<1xf32>
    %18 = vector.shape_cast %17 : vector<1xf32> to vector<1x1xf32>
    %19 = vector.broadcast %18 : vector<1x1xf32> to vector<2x1xf32>
    %20 = arith.subf %16, %19 : vector<2x1xf32>
    %21 = math.exp %20 : vector<2x1xf32>
    %cst_10 = arith.constant dense<0.000000e+00> : vector<1xf32>
    %22 = vector.multi_reduction <add>, %21, %cst_10 [0] : vector<2x1xf32> to vector<1xf32>
    %23 = vector.shape_cast %22 : vector<1xf32> to vector<1x1xf32>
    %24 = vector.broadcast %23 : vector<1x1xf32> to vector<2x1xf32>
    %25 = arith.divf %21, %24 : vector<2x1xf32>
    %c0_11 = arith.constant 0 : index
    %c0_12 = arith.constant 0 : index
    %26 = vector.load %arg4[%c0_11, %c0_12] : memref<2x4xbf16, #tpu.memory_space<vmem>>, vector<2x4xbf16>
    %27 = arith.extf %26 : vector<2x4xbf16> to vector<2x4xf32>
    %28 = vector.broadcast %25 : vector<2x1xf32> to vector<2x4xf32>
    %29 = arith.mulf %28, %27 : vector<2x4xf32>
    %cst_13 = arith.constant dense<0.000000e+00> : vector<4xf32>
    %30 = vector.multi_reduction <add>, %29, %cst_13 [0] : vector<2x4xf32> to vector<4xf32>
    %31 = vector.shape_cast %30 : vector<4xf32> to vector<1x4xf32>
    %c0_14 = arith.constant 0 : index
    %c0_15 = arith.constant 0 : index
    %32 = vector.load %arg5[%c0_14, %c0_15] : memref<2x1xf32, #tpu.memory_space<vmem>>, vector<2x1xf32>
    %33 = arith.mulf %25, %32 : vector<2x1xf32>
    %34 = vector.shape_cast %33 : vector<2x1xf32> to vector<1x2x1xf32>
    %cst_16 = arith.constant dense<0.000000e+00> : vector<1xf32>
    %35 = vector.multi_reduction <add>, %34, %cst_16 [1, 2] : vector<1x2x1xf32> to vector<1xf32>
    %36 = vector.shape_cast %35 : vector<1xf32> to vector<1x1x1xf32>
    %37 = vector.extract %36[0, 0, 0] : f32 from vector<1x1x1xf32>
    %38 = vector.broadcast %37 : f32 to vector<1x1xf32>
    %39 = arith.truncf %31 : vector<1x4xf32> to vector<1x4xbf16>
    %cst_17 = arith.constant dense<0.000000e+00> : vector<1x256xf32>
    %40 = tpu.matmul %39, %2, %cst_17 {dimension_numbers = #tpu.dot_dimension_numbers<[1], [0], [0], [1], [0, 0, 1, 1], [], []>} : vector<1x4xbf16>, vector<4x256xbf16>, vector<1x256xf32> -> vector<1x256xf32>
    %41 = vector.broadcast %38 : vector<1x1xf32> to vector<1x256xf32>
    %42 = arith.addf %40, %41 : vector<1x256xf32>
    %43 = arith.negf %42 : vector<1x256xf32>
    %44 = math.exp %43 : vector<1x256xf32>
    %cst_18 = arith.constant 1.000000e+00 : f32
    %45 = vector.broadcast %cst_18 : f32 to vector<1x256xf32>
    %46 = arith.addf %45, %44 : vector<1x256xf32>
    %47 = arith.divf %45, %46 : vector<1x256xf32>
    %48 = vector.broadcast %47 : vector<1x256xf32> to vector<4x256xf32>
    %49 = arith.mulf %48, %9 : vector<4x256xf32>
    %c0_19 = arith.constant 0 : index
    %c0_20 = arith.constant 0 : index
    %50 = vector.load %arg6[%c0_19, %c0_20] : memref<4x1xf32, #tpu.memory_space<vmem>>, vector<4x1xf32>
    %51 = vector.broadcast %50 : vector<4x1xf32> to vector<4x256xf32>
    %52 = arith.addf %49, %51 : vector<4x256xf32>
    %53 = arith.addf %52, %1 : vector<4x256xf32>
    %cst_21 = arith.constant 0.000000e+00 : f32
    %54 = vector.broadcast %cst_21 : f32 to vector<4x256xf32>
    %55 = arith.maximumf %53, %54 : vector<4x256xf32>
    %c0_22 = arith.constant 0 : index
    %c0_23 = arith.constant 0 : index
    %c0_24 = arith.constant 0 : index
    %56 = vector.load %arg7[%c0_22, %c0_23, %c0_24] : memref<1x4x256xf32, #tpu.memory_space<vmem>>, vector<1x4x256xf32>
    %57 = vector.shape_cast %56 : vector<1x4x256xf32> to vector<4x256xf32>
    %58 = vector.shape_cast %55 : vector<4x256xf32> to vector<1x4x256xf32>
    tpu.vector_store %arg7[%c0_22, %c0_23, %c0_24], %58 {strides = array<i32>} : memref<1x4x256xf32, #tpu.memory_space<vmem>>, vector<1x4x256xf32>,
    return
  }
  func.func @transform_0(%arg0: i32) -> (i32, i32, i32) {
    %c0_i32 = arith.constant 0 : i32
    %c0_i32_0 = arith.constant 0 : i32
    %c0_i32_1 = arith.constant 0 : i32
    return %arg0, %c0_i32, %c0_i32_0 : i32, i32, i32
  }
  func.func @transform_1(%arg0: i32) -> (i32, i32) {
    %c0_i32 = arith.constant 0 : i32
    %c0_i32_0 = arith.constant 0 : i32
    %c0_i32_1 = arith.constant 0 : i32
    return %c0_i32, %c0_i32_0 : i32, i32
  }
  func.func @transform_2(%arg0: i32) -> (i32, i32) {
    %c0_i32 = arith.constant 0 : i32
    %c0_i32_0 = arith.constant 0 : i32
    %c0_i32_1 = arith.constant 0 : i32
    return %c0_i32, %c0_i32_0 : i32, i32
  }
  func.func @transform_3(%arg0: i32) -> (i32, i32) {
    %c0_i32 = arith.constant 0 : i32
    %c0_i32_0 = arith.constant 0 : i32
    %c0_i32_1 = arith.constant 0 : i32
    return %c0_i32, %c0_i32_0 : i32, i32
  }
  func.func @transform_4(%arg0: i32) -> (i32, i32) {
    %c0_i32 = arith.constant 0 : i32
    %c0_i32_0 = arith.constant 0 : i32
    %c0_i32_1 = arith.constant 0 : i32
    return %c0_i32, %c0_i32_0 : i32, i32
  }
  func.func @transform_5(%arg0: i32) -> (i32, i32) {
    %c0_i32 = arith.constant 0 : i32
    %c0_i32_0 = arith.constant 0 : i32
    %c0_i32_1 = arith.constant 0 : i32
    return %c0_i32, %c0_i32_0 : i32, i32
  }
  func.func @transform_6(%arg0: i32) -> (i32, i32, i32) {
    %c0_i32 = arith.constant 0 : i32
    %c0_i32_0 = arith.constant 0 : i32
    %c0_i32_1 = arith.constant 0 : i32
    return %arg0, %c0_i32, %c0_i32_0 : i32, i32, i32
  }
}

</mosaic_0001>

<llo_original>
// kernel: tpu_custom_call.1
$region0: #{tpu_custom_call.1}
  #allocation0 [shape = 'u32[]', space=smem, size = 0x4, offset = 0x4, fixed_abs, tag = 'smem constant byte address 0x4 - core index']
  #allocation1 [shape = 'u32[72,128]{1,0:T(1,128)}', space=vmem, size = 0x9000, scoped, tag = 'internal scratch']
  %s0 = inlined_call_operand.hbm [shape: f32[2,4,256], index: 0, kind: input, shape index: {}]
  %s1 = inlined_call_operand.vmem [shape: bf16[6,4], index: 1, kind: input, shape index: {}]
  %s2 = inlined_call_operand.vmem [shape: f32[6,1], index: 2, kind: input, shape index: {}]
  %s3 = inlined_call_operand.vmem [shape: bf16[2,4], index: 3, kind: input, shape index: {}]
  %s4 = inlined_call_operand.vmem [shape: f32[2,1], index: 4, kind: input, shape index: {}]
  %s5 = inlined_call_operand.vmem [shape: f32[4,1], index: 5, kind: input, shape index: {}]
  %s6 = inlined_call_operand.hbm [shape: f32[2,4,256], index: 6, kind: output, shape index: {}]
  %s7 = sld [smem:[#allocation0]]
  $region61: #{tpu_custom_call.1} parent=0
    _
  %s9 = ssub.s32 1, %s7
  %s10 = scalar_select 0, %s9, %s7
  $region1: #{tpu_custom_call.1} parent=0
    #allocation2 [shape = 'u8[8192]{0}', space=vmem, size = 0x2000, scoped, tag = 'input window, operand 0']
    #allocation3 [shape = 's32[2]{0}', space=sflag, size = 0x8, scoped, tag = 'scoped memory for tpu_custom_call.1']
    #allocation4 [shape = 's32[2]{0}', space=sflag, size = 0x8, scoped, tag = 'scoped memory for tpu_custom_call.1']
    #allocation5 [shape = 'u8[8192]{0}', space=vmem, size = 0x2000, scoped, tag = 'output window, operand 0']
    %11 = vsyncpa [#allocation3], 0
    %s12 = scalar_lea.sflag [#allocation3], 1
    %13 = vsyncpa %s12, 0
    %14 = vsyncpa [#allocation4], 0
    %s15 = scalar_lea.sflag [#allocation4], 1
    %16 = vsyncpa %s15, 0
    loop: start=0, step=1, limit=4
    $region2: #{tpu_custom_call.1} parent=1 // loop_pre_header
      _
    $region3: #{tpu_custom_call.1} parent=1 // loop_header
      %s18 = sphi 0, %s22
      %p19 = scmp.ge.s32.totalorder %s18, 4
      %s28 = sphi 0, %s30
      %s31 = sphi 0, %s28
      %s32 = sphi 0, %s31
      %s48 = sphi 0, %s32
      %s52 = sphi 0, %s52
      %s54 = sphi 0, %s52
      %s55 = sphi 0, %s54
      %s69 = sphi 0, %s55
      %s73 = sphi 0, %s73
      %s75 = sphi 0, %s73
      %s76 = sphi 0, %s75
      %s90 = sphi 0, %s76
      %s94 = sphi 0, %s94
      %s96 = sphi 0, %s94
      %s97 = sphi 0, %s96
      %s111 = sphi 0, %s97
      %s115 = sphi 0, %s115
      %s117 = sphi 0, %s115
      %s118 = sphi 0, %s117
      %s132 = sphi 0, %s118
      %s136 = sphi 0, %s136
      %s138 = sphi 0, %s136
      %s139 = sphi 0, %s138
      %s153 = sphi 0, %s139
      %s159 = sphi 0, %s161
      %s162 = sphi 0, %s159
      %s163 = sphi 0, %s162
      %s179 = sphi 0, %s163
    $region4: #{tpu_custom_call.1} parent=1 // loop_header_branch
      %21 = sbr.rel (%p19) target = $region8
    $region5: #{tpu_custom_call.1} parent=1 // loop_body
      %s23 = ssub.s32 %s18, 1
      %s24 = ssub.s32 %s18, 2
      %s25 = sadd.s32 %s18, 1
      %s26 = ssub.s32 %s18, %s25
      %p27 = scmp.eq.s32.totalorder %s26, 0
      %s29 = sadd.s32 %s28, 1
      %s30 = scalar_select %p27, %s28, %s29
      %p33 = pneg %p27
      %p34 = scmp.eq.s32.totalorder %s18, 1
      %p35 = por %p33, %p34
      %p36 = scmp.ne.s32.totalorder %s28, %s31
      %p37 = scmp.eq.s32.totalorder %s18, 0
      %p38 = por %p36, %p37
      %p39 = scmp.ne.s32.totalorder %s28, %s31
      %p40 = scmp.eq.s32.totalorder %s23, 1
      %p41 = por %p39, %p40
      %p42 = scmp.ne.s32.totalorder %s31, %s32
      %p43 = scmp.eq.s32.totalorder %s23, 0
      %p44 = por %p42, %p43
      %p45 = scmp.ne.s32.totalorder %s31, %s32
      %p46 = scmp.eq.s32.totalorder %s24, 1
      %p47 = por %p45, %p46
      %p49 = scmp.ne.s32.totalorder %s32, %s48
      %p50 = scmp.eq.s32.totalorder %s24, 0
      %p51 = por %p49, %p50
      %s53 = sadd.s32 %s52, 1
      %p56 = scmp.eq.s32.totalorder %s18, 1
      %p57 = scmp.ne.s32.totalorder %s52, %s54
      %p58 = scmp.eq.s32.totalorder %s18, 0
      %p59 = por %p57, %p58
      %p60 = scmp.ne.s32.totalorder %s52, %s54
      %p61 = scmp.eq.s32.totalorder %s23, 1
      %p62 = por %p60, %p61
      %p63 = scmp.ne.s32.totalorder %s54, %s55
      %p64 = scmp.eq.s32.totalorder %s23, 0
      %p65 = por %p63, %p64
      %p66 = scmp.ne.s32.totalorder %s54, %s55
      %p67 = scmp.eq.s32.totalorder %s24, 1
      %p68 = por %p66, %p67
      %p70 = scmp.ne.s32.totalorder %s55, %s69
      %p71 = scmp.eq.s32.totalorder %s24, 0
      %p72 = por %p70, %p71
      %s74 = sadd.s32 %s73, 1
      %p77 = scmp.eq.s32.totalorder %s18, 1
      %p78 = scmp.ne.s32.totalorder %s73, %s75
      %p79 = scmp.eq.s32.totalorder %s18, 0
      %p80 = por %p78, %p79
      %p81 = scmp.ne.s32.totalorder %s73, %s75
      %p82 = scmp.eq.s32.totalorder %s23, 1
      %p83 = por %p81, %p82
      %p84 = scmp.ne.s32.totalorder %s75, %s76
      %p85 = scmp.eq.s32.totalorder %s23, 0
      %p86 = por %p84, %p85
      %p87 = scmp.ne.s32.totalorder %s75, %s76
      %p88 = scmp.eq.s32.totalorder %s24, 1
      %p89 = por %p87, %p88
      %p91 = scmp.ne.s32.totalorder %s76, %s90
      %p92 = scmp.eq.s32.totalorder %s24, 0
      %p93 = por %p91, %p92
      %s95 = sadd.s32 %s94, 1
      %p98 = scmp.eq.s32.totalorder %s18, 1
      %p99 = scmp.ne.s32.totalorder %s94, %s96
      %p100 = scmp.eq.s32.totalorder %s18, 0
      %p101 = por %p99, %p100
      %p102 = scmp.ne.s32.totalorder %s94, %s96
      %p103 = scmp.eq.s32.totalorder %s23, 1
      %p104 = por %p102, %p103
      %p105 = scmp.ne.s32.totalorder %s96, %s97
      %p106 = scmp.eq.s32.totalorder %s23, 0
      %p107 = por %p105, %p106
      %p108 = scmp.ne.s32.totalorder %s96, %s97
      %p109 = scmp.eq.s32.totalorder %s24, 1
      %p110 = por %p108, %p109
      %p112 = scmp.ne.s32.totalorder %s97, %s111
      %p113 = scmp.eq.s32.totalorder %s24, 0
      %p114 = por %p112, %p113
      %s116 = sadd.s32 %s115, 1
      %p119 = scmp.eq.s32.totalorder %s18, 1
      %p120 = scmp.ne.s32.totalorder %s115, %s117
      %p121 = scmp.eq.s32.totalorder %s18, 0
      %p122 = por %p120, %p121
      %p123 = scmp.ne.s32.totalorder %s115, %s117
      %p124 = scmp.eq.s32.totalorder %s23, 1
      %p125 = por %p123, %p124
      %p126 = scmp.ne.s32.totalorder %s117, %s118
      %p127 = scmp.eq.s32.totalorder %s23, 0
      %p128 = por %p126, %p127
      %p129 = scmp.ne.s32.totalorder %s117, %s118
      %p130 = scmp.eq.s32.totalorder %s24, 1
      %p131 = por %p129, %p130
      %p133 = scmp.ne.s32.totalorder %s118, %s132
      %p134 = scmp.eq.s32.totalorder %s24, 0
      %p135 = por %p133, %p134
      %s137 = sadd.s32 %s136, 1
      %p140 = scmp.eq.s32.totalorder %s18, 1
      %p141 = scmp.ne.s32.totalorder %s136, %s138
      %p142 = scmp.eq.s32.totalorder %s18, 0
      %p143 = por %p141, %p142
      %p144 = scmp.ne.s32.totalorder %s136, %s138
      %p145 = scmp.eq.s32.totalorder %s23, 1
      %p146 = por %p144, %p145
      %p147 = scmp.ne.s32.totalorder %s138, %s139
      %p148 = scmp.eq.s32.totalorder %s23, 0
      %p149 = por %p147, %p148
      %p150 = scmp.ne.s32.totalorder %s138, %s139
      %p151 = scmp.eq.s32.totalorder %s24, 1
      %p152 = por %p150, %p151
      %p154 = scmp.ne.s32.totalorder %s139, %s153
      %p155 = scmp.eq.s32.totalorder %s24, 0
      %p156 = por %p154, %p155
      %s157 = ssub.s32 %s18, %s25
      %p158 = scmp.eq.s32.totalorder %s157, 0
      %s160 = sadd.s32 %s159, 1
      %s161 = scalar_select %p158, %s159, %s160
      %p164 = pneg %p158
      %p165 = scmp.eq.s32.totalorder %s18, 1
      %p166 = por %p164, %p165
      %p167 = scmp.ne.s32.totalorder %s159, %s162
      %p168 = scmp.eq.s32.totalorder %s18, 0
      %p169 = por %p167, %p168
      %p170 = scmp.ne.s32.totalorder %s159, %s162
      %p171 = scmp.eq.s32.totalorder %s23, 1
      %p172 = por %p170, %p171
      %p173 = scmp.ne.s32.totalorder %s162, %s163
      %p174 = scmp.eq.s32.totalorder %s23, 0
      %p175 = por %p173, %p174
      %p176 = scmp.ne.s32.totalorder %s162, %s163
      %p177 = scmp.eq.s32.totalorder %s24, 1
      %p178 = por %p176, %p177
      %p180 = scmp.ne.s32.totalorder %s163, %s179
      %p181 = scmp.eq.s32.totalorder %s24, 0
      %p182 = por %p180, %p181
      %p183 = scmp.le.s32.totalorder 1, %s18
      %p184 = scmp.lt.s32.totalorder %s18, 3
      %p185 = pnand %p183, %p184
      %p186 = pneg %p185
      // Predicated region
      $region9: #{tpu_custom_call.1} parent=5 // pred_check
        _
      $region10: #{tpu_custom_call.1} parent=5 // pred_check_branch
        %188 = sbr.rel (%p185) target = $region12
      $region11: #{tpu_custom_call.1} parent=5 // pred_region
        %s189 = ssub.s32 %s18, 1
        // Predicated region
        $region13: #{tpu_custom_call.1} parent=11 // pred_check
          %p190 = pneg %p65
        $region14: #{tpu_custom_call.1} parent=11 // pred_check_branch
          %192 = sbr.rel (%p190) target = $region16
        $region15: #{tpu_custom_call.1} parent=11 // pred_region
          _
        $region16: #{tpu_custom_call.1} parent=11 // pred_fallthru
          _
        // Predicated region
        $region17: #{tpu_custom_call.1} parent=11 // pred_check
          %p193 = pneg %p86
        $region18: #{tpu_custom_call.1} parent=11 // pred_check_branch
          %195 = sbr.rel (%p193) target = $region20
        $region19: #{tpu_custom_call.1} parent=11 // pred_region
          _
        $region20: #{tpu_custom_call.1} parent=11 // pred_fallthru
          _
        // Predicated region
        $region21: #{tpu_custom_call.1} parent=11 // pred_check
          %p196 = pneg %p107
        $region22: #{tpu_custom_call.1} parent=11 // pred_check_branch
          %198 = sbr.rel (%p196) target = $region24
        $region23: #{tpu_custom_call.1} parent=11 // pred_region
          _
        $region24: #{tpu_custom_call.1} parent=11 // pred_fallthru
          _
        // Predicated region
        $region25: #{tpu_custom_call.1} parent=11 // pred_check
          %p199 = pneg %p128
        $region26: #{tpu_custom_call.1} parent=11 // pred_check_branch
          %201 = sbr.rel (%p199) target = $region28
        $region27: #{tpu_custom_call.1} parent=11 // pred_region
          _
        $region28: #{tpu_custom_call.1} parent=11 // pred_fallthru
          _
        // Predicated region
        $region29: #{tpu_custom_call.1} parent=11 // pred_check
          %p202 = pneg %p149
        $region30: #{tpu_custom_call.1} parent=11 // pred_check_branch
          %204 = sbr.rel (%p202) target = $region32
        $region31: #{tpu_custom_call.1} parent=11 // pred_region
          _
        $region32: #{tpu_custom_call.1} parent=11 // pred_fallthru
          _
      $region12: #{tpu_custom_call.1} parent=5 // pred_fallthru
        _
      %p205 = scmp.lt.s32.totalorder %s18, 2
      // Predicated region
      $region33: #{tpu_custom_call.1} parent=5 // pred_check
        %p206 = pneg %p205
      $region34: #{tpu_custom_call.1} parent=5 // pred_check_branch
        %208 = sbr.rel (%p206) target = $region36
      $region35: #{tpu_custom_call.1} parent=5 // pred_region
        // Predicated region
        $region37: #{tpu_custom_call.1} parent=35 // pred_check
          %p209 = pneg %p38
        $region38: #{tpu_custom_call.1} parent=35 // pred_check_branch
          %211 = sbr.rel (%p209) target = $region40
        $region39: #{tpu_custom_call.1} parent=35 // pred_region
          %s212 = sand.u32 %s28, 1
          %s213 = scalar_lea.sflag [#allocation3], %s212
          %s214 = sand.u32 %s28, 1
          %s215 = smul.addr %s214, 8
          %s216 = scalar_lea.vmem [#allocation2], %s215
          %218 = vsyncadd %s213, 0
          %s219 = smul.addr %s18, 2
          %s220 = smul.addr %s219, 4
          %s221 = scalar_lea.hbm %s0, %s220
          %s223 = sshll.u32 %s221, 4
          %s224 = int_to_ptr.hbm [resolvable:$true] %s223
          %s225 = sshll.u32 %s216, 4
          %s226 = int_to_ptr.vmem [resolvable:$true] %s225
          %228 = dma.hbm_to_vmem [thread:$0]  %s224, 128, %s226, %s213
        $region40: #{tpu_custom_call.1} parent=35 // pred_fallthru
          _
      $region36: #{tpu_custom_call.1} parent=5 // pred_fallthru
        _
      %p229 = scmp.le.s32.totalorder 1, %s18
      %p230 = scmp.lt.s32.totalorder %s18, 3
      %p231 = pnand %p229, %p230
      %p232 = pneg %p231
      // Predicated region
      $region41: #{tpu_custom_call.1} parent=5 // pred_check
        _
      $region42: #{tpu_custom_call.1} parent=5 // pred_check_branch
        %234 = sbr.rel (%p231) target = $region44
      $region43: #{tpu_custom_call.1} parent=5 // pred_region
        %s235 = ssub.s32 %s18, 1
        %s236 = sand.u32 %s31, 1
        %s237 = scalar_lea.sflag [#allocation3], %s236
        %s238 = sand.u32 %s31, 1
        %s239 = smul.addr %s238, 8
        %s240 = scalar_lea.vmem [#allocation2], %s239
        // Predicated region
        $region45: #{tpu_custom_call.1} parent=43 // pred_check
          %p241 = pneg %p44
        $region46: #{tpu_custom_call.1} parent=43 // pred_check_branch
          %243 = sbr.rel (%p241) target = $region48
        $region47: #{tpu_custom_call.1} parent=43 // pred_region
          %245 = dma.done %s237, 128
        $region48: #{tpu_custom_call.1} parent=43 // pred_fallthru
          _
        %s246 = sand.u32 %s31, 1
        %s247 = scalar_lea.sflag [#allocation3], %s246
        %s248 = sand.u32 %s31, 1
        %s249 = smul.addr %s248, 8
        %s250 = scalar_lea.vmem [#allocation2], %s249
        %p251 = pneg %p44
        %p252 = pneg %p41
        %p253 = pneg %p65
        %p254 = pneg %p62
        %p255 = pneg %p86
        %p256 = pneg %p83
        %p257 = pneg %p107
        %p258 = pneg %p104
        %p259 = pneg %p128
        %p260 = pneg %p125
        %p261 = pneg %p149
        %p262 = pneg %p146
        %p263 = pneg %p175
        %p264 = pneg %p172
        %s265 = sand.u32 %s162, 1
        %s266 = scalar_lea.sflag [#allocation4], %s265
        %s267 = sand.u32 %s162, 1
        %s268 = smul.addr %s267, 8
        %s269 = scalar_lea.vmem [#allocation5], %s268
        %v271 = vld [vmem:[%s240] sm:$0xff]
        %273 = vst [vmem:[#allocation1] ss:$2 sm:$0xff] %v271
        %v274 = vld.sshfl [vmem:[#allocation1] sm:$0xff pattern:$0x75316420]
        %v275 = vld.sshfl [vmem:[#allocation1 + $0x8] sm:$0xff pattern:$0x75316420]
        %v278 = vpack.c.bf16 %v274, %v274
        %v279 = vpack.c.bf16 %v275, %v275
        %v280 = vld [vmem:[%s1] sm:$0x7]
        %v281 = vld [vmem:[%s2] sm:$0x3f]
        %283 = vset.pattern.permute.xlu0 0
        %284 = vperm.xlu0 %283, %v281
        %v285 = vpop.permute.xlu0 %284
        %vm287 = vcmask 31744
        %v289 = vsel %vm287, %v280, 0
        %vm291 = vcmask 1041408
        %v293 = vsel %vm291, %v278, 0
        %v296 = vsel %vm291, %v279, 0
        %298 = vmatpush.bf16.msra.mxu0 0
        %299 = vmatpush.bf16.msra.mxu0 0
        %300 = vmatpush.bf16.msra.mxu0 0
        %301 = vmatpush.bf16.msra.mxu0 0
        %302 = vmatpush.bf16.msra.mxu0 0
        %303 = vmatpush.bf16.msra.mxu0 0
        %304 = vmatpush.bf16.msra.mxu0 0
        %305 = vmatpush.bf16.msra.mxu0 %v293
        %306 = vmatmul.bf16.gmra.mxu0 %v289
        %v307 = vpop.f32.mrf.mxu0
        %v308 = vadd.f32 %v285, %v307
        %v309 = vpop.f32.mrf.mxu0
        %310 = vdwg.mxu0
        %311 = vmatpush.bf16.msra.mxu0 0
        %312 = vmatpush.bf16.msra.mxu0 0
        %313 = vmatpush.bf16.msra.mxu0 0
        %314 = vmatpush.bf16.msra.mxu0 0
        %315 = vmatpush.bf16.msra.mxu0 0
        %316 = vmatpush.bf16.msra.mxu0 0
        %317 = vmatpush.bf16.msra.mxu0 0
        %318 = vmatpush.bf16.msra.mxu0 %v296
        %319 = vmatmul.bf16.gmra.mxu0 %v289
        %v320 = vpop.f32.mrf.mxu0
        %v321 = vadd.f32 %v285, %v320
        %v322 = vpop.f32.mrf.mxu0
        %323 = vdwg.mxu0
        %v324 = vsel %vm291, %v308, 0.0
        %v325 = vsel %vm291, %v321, 0.0
        %v326 = vadd.f32 %v324, %v325
        %327 = vadd.xlane.f32.xlu0 %v326
        %v328 = vpop.xlane.xlu0 %327
        %v329 = vmul.f32 %v328, 0.00390625
        %v330 = vsel %vm291, %v308, -inf
        %v331 = vsel %vm291, %v321, -inf
        %v332 = vmax.f32 %v330, %v331
        %333 = vmax.xlane.f32.xlu0 %v332
        %v334 = vpop.xlane.xlu0 %333
        %v335 = vadd.f32 %v329, %v334
        %v336 = vsel %vm291, %v335, -inf
        %v337 = vrot.slane %v336, 4
        %v338 = vmax.f32 %v336, %v337
        %v339 = vrot.slane %v338, 2
        %v340 = vmax.f32 %v338, %v339
        %v341 = vrot.slane %v340, 1
        %v342 = vmax.f32 %v340, %v341
        %v343 = vsub.f32 %v335, %v342
        %v344 = vmul.f32 %v343, 1.442695
        %v345 = vpow.pop %v344
        %v346 = vsel %vm291, %v345, 0.0
        %v347 = vrot.slane %v346, 4
        %v348 = vadd.f32 %v346, %v347
        %v349 = vrot.slane %v348, 2
        %v350 = vadd.f32 %v348, %v349
        %v351 = vrot.slane %v350, 1
        %v352 = vadd.f32 %v350, %v351
        %v353 = vrcp.pop %v352
        %v354 = vmul.f32 %v352, %v353
        %v355 = vsub.f32 1.0, %v354
        %v356 = vmul.f32 %v353, %v355
        %v357 = vadd.f32 %v353, %v356
        %vm358 = vweird.f32 %v352
        %vm359 = vweird.f32 %v353
        %vm360 = vmor %vm358, %vm359
        %v361 = vsel %vm360, %v353, %v357
        %v362 = vand.u32 2147483647, %v352
        %vm363 = vcmp.eq.f32.partialorder %v362, 8.507059e+37
        %v364 = vand.u32 %v352, 2147483648
        %v365 = vor.u32 1.1754944e-38, %v364
        %v366 = vsel %vm363, %v365, %v361
        %v367 = vmul.f32 %v345, %v366
        %v368 = vld [vmem:[%s3] sm:$0x1]
        %v369 = vunpack.c.l.bf16 %v368
        %v370 = vmul.f32 %v367, %v369
        %vm371 = vcmask 25600
        %v372 = vsel %vm371, %v370, 0.0
        %v373 = vrot.slane %v372, 4
        %v374 = vadd.f32 %v372, %v373
        %v375 = vrot.slane %v374, 2
        %v376 = vadd.f32 %v374, %v375
        %v377 = vrot.slane %v376, 1
        %v378 = vadd.f32 %v376, %v377
        %v379 = vld [vmem:[%s4] sm:$0x3]
        %v380 = vmul.f32 %v367, %v379
        %vm381 = vcmask 1024
        %v382 = vsel %vm381, %v380, 0.0
        %383 = vadd.xlane.f32.xlu0 %v382
        %v384 = vpop.xlane.xlu0 %383
        %v385 = vrot.slane %v384, 4
        %v386 = vadd.f32 %v384, %v385
        %v387 = vrot.slane %v386, 2
        %v388 = vadd.f32 %v386, %v387
        %v389 = vrot.slane %v388, 1
        %v390 = vadd.f32 %v388, %v389
        %s391 = vtos %v390
        %v392 = vpack.c.bf16 %v378, %v378
        %v393 = vstv %s391
        %v395 = vsel %vm287, %v392, 0
        %397 = vmatpush.bf16.msra.mxu0 0
        %398 = vmatpush.bf16.msra.mxu0 0
        %399 = vmatpush.bf16.msra.mxu0 0
        %400 = vmatpush.bf16.msra.mxu0 0
        %401 = vmatpush.bf16.msra.mxu0 0
        %402 = vmatpush.bf16.msra.mxu0 0
        %403 = vmatpush.bf16.msra.mxu0 0
        %404 = vmatpush.bf16.msra.mxu0 %v293
        %405 = vmatmul.bf16.gmra.mxu0 %v395
        %v406 = vpop.f32.mrf.mxu0
        %v407 = vadd.f32 %v393, %v406
        %v408 = vpop.f32.mrf.mxu0
        %409 = vdwg.mxu0
        %410 = vmatpush.bf16.msra.mxu0 0
        %411 = vmatpush.bf16.msra.mxu0 0
        %412 = vmatpush.bf16.msra.mxu0 0
        %413 = vmatpush.bf16.msra.mxu0 0
        %414 = vmatpush.bf16.msra.mxu0 0
        %415 = vmatpush.bf16.msra.mxu0 0
        %416 = vmatpush.bf16.msra.mxu0 0
        %417 = vmatpush.bf16.msra.mxu0 %v296
        %418 = vmatmul.bf16.gmra.mxu0 %v395
        %v419 = vpop.f32.mrf.mxu0
        %v420 = vadd.f32 %v393, %v419
        %v421 = vpop.f32.mrf.mxu0
        %422 = vdwg.mxu0
        %v423 = vxor.u32 %v407, 2147483648
        %v424 = vxor.u32 %v420, 2147483648
        %v425 = vmul.f32 %v423, 1.442695
        %v426 = vpow.pop %v425
        %v427 = vmul.f32 %v424, 1.442695
        %v428 = vpow.pop %v427
        %v429 = vadd.f32 %v426, 1.0
        %v430 = vadd.f32 %v428, 1.0
        %v431 = vrcp.pop %v429
        %v432 = vmul.f32 %v429, %v431
        %v433 = vsub.f32 1.0, %v432
        %v434 = vmul.f32 %v431, %v433
        %v435 = vadd.f32 %v431, %v434
        %vm436 = vweird.f32 %v429
        %vm437 = vweird.f32 %v431
        %vm438 = vmor %vm436, %vm437
        %v439 = vsel %vm438, %v431, %v435
        %v440 = vand.u32 2147483647, %v429
        %vm441 = vcmp.eq.f32.partialorder %v440, 8.507059e+37
        %v442 = vand.u32 %v429, 2147483648
        %v443 = vor.u32 1.1754944e-38, %v442
        %v444 = vsel %vm441, %v443, %v439
        %v445 = vmul.f32 1.0, %v444
        %v446 = vrcp.pop %v430
        %v447 = vmul.f32 %v430, %v446
        %v448 = vsub.f32 1.0, %v447
        %v449 = vmul.f32 %v446, %v448
        %v450 = vadd.f32 %v446, %v449
        %vm451 = vweird.f32 %v430
        %vm452 = vweird.f32 %v446
        %vm453 = vmor %vm451, %vm452
        %v454 = vsel %vm453, %v446, %v450
        %v455 = vand.u32 2147483647, %v430
        %vm456 = vcmp.eq.f32.partialorder %v455, 8.507059e+37
        %v457 = vand.u32 %v430, 2147483648
        %v458 = vor.u32 1.1754944e-38, %v457
        %v459 = vsel %vm456, %v458, %v454
        %v460 = vmul.f32 1.0, %v459
        %v461 = vperm.slane %v445, 0
        %v462 = vperm.slane %v460, 0
        %v463 = vmul.f32 %v461, %v308
        %v464 = vmul.f32 %v462, %v321
        %v465 = vld [vmem:[%s5] sm:$0xf]
        %467 = vset.pattern.permute.xlu0 0
        %468 = vperm.xlu0 %467, %v465
        %v469 = vpop.permute.xlu0 %468
        %v470 = vrot.slane %v469, 6
        %v472 = vadd.f32 %v463, %v470
        %v473 = vadd.f32 %v464, %v470
        %474 = vst [vmem:[#allocation1] ss:$2 sm:$0xff] %v271
        %v475 = vld.sshfl [vmem:[#allocation1] sm:$0xff pattern:$0x75316420]
        %v476 = vld.sshfl [vmem:[#allocation1 + $0x8] sm:$0xff pattern:$0x75316420]
        %v477 = vrot.slane %v475, 6
        %v478 = vrot.slane %v476, 6
        %v481 = vadd.f32 %v472, %v477
        %v482 = vadd.f32 %v473, %v478
        %v483 = vmax.f32 %v481, 0.0
        %v484 = vmax.f32 %v482, 0.0
        %v487 = vrot.slane %v484, 4
        %vm488 = vcmask 1043456
        %v489 = vsel %vm488, %v483, %v487
        %v490 = vsel %vm488, %v487, %v483
        %v491 = vrot.slane %v490, 4
        %vm492 = vcmask 1045508
        %vm493 = vmor %vm291, %vm492
        %v494 = vrot.slane %v489, 6
        %v495 = vrot.slane %v494, 4
        %v496 = vrot.slane %v491, 6
        %v497 = vsel %vm493, %v495, %v496
        %499 = vst [vmem:[%s269] sm:$0xff] %v497
        %s500 = sand.u32 %s162, 1
        %s501 = scalar_lea.sflag [#allocation4], %s500
        %s502 = sand.u32 %s162, 1
        %s503 = smul.addr %s502, 8
        %s504 = scalar_lea.vmem [#allocation5], %s503
        // Predicated region
        $region49: #{tpu_custom_call.1} parent=43 // pred_check
          %p505 = pneg %p172
        $region50: #{tpu_custom_call.1} parent=43 // pred_check_branch
          %507 = sbr.rel (%p505) target = $region52
        $region51: #{tpu_custom_call.1} parent=43 // pred_region
          %509 = vsyncadd %s501, 0
          %s510 = smul.addr %s23, 2
          %s511 = smul.addr %s510, 4
          %s512 = scalar_lea.hbm %s6, %s511
          %s514 = sshll.u32 %s504, 4
          %s515 = int_to_ptr.vmem [resolvable:$true] %s514
          %s516 = sshll.u32 %s512, 4
          %s517 = int_to_ptr.hbm [resolvable:$true] %s516
          %519 = dma.vmem_to_hbm [thread:$0]  %s515, 128, %s517, %s501
        $region52: #{tpu_custom_call.1} parent=43 // pred_fallthru
          _
      $region44: #{tpu_custom_call.1} parent=5 // pred_fallthru
        _
      %p520 = scmp.le.s32.totalorder 2, %s18
      // Predicated region
      $region53: #{tpu_custom_call.1} parent=5 // pred_check
        %p521 = pneg %p520
      $region54: #{tpu_custom_call.1} parent=5 // pred_check_branch
        %523 = sbr.rel (%p521) target = $region56
      $region55: #{tpu_custom_call.1} parent=5 // pred_region
        %s524 = ssub.s32 %s18, 2
        // Predicated region
        $region57: #{tpu_custom_call.1} parent=55 // pred_check
          %p525 = pneg %p178
        $region58: #{tpu_custom_call.1} parent=55 // pred_check_branch
          %527 = sbr.rel (%p525) target = $region60
        $region59: #{tpu_custom_call.1} parent=55 // pred_region
          %s528 = sand.u32 %s163, 1
          %s529 = scalar_lea.sflag [#allocation4], %s528
          %s530 = sand.u32 %s163, 1
          %s531 = smul.addr %s530, 8
          %s532 = scalar_lea.vmem [#allocation5], %s531
          %534 = dma.done %s529, 128
        $region60: #{tpu_custom_call.1} parent=55 // pred_fallthru
          _
      $region56: #{tpu_custom_call.1} parent=5 // pred_fallthru
        _
    $region6: #{tpu_custom_call.1} parent=1 // loop_footer
      %s22 = sadd.s32 1, %s18
    $region7: #{tpu_custom_call.1} parent=1 // loop_footer_branch
      %17 = sbr.rel target = $region3
    $region8: #{tpu_custom_call.1} parent=1 // loop_exit
      _
    %535 = vsyncpa [#allocation3], 1
    %s536 = scalar_lea.sflag [#allocation3], 1
    %537 = vsyncpa %s536, 1
    %538 = vsyncpa [#allocation4], 1
    %s539 = scalar_lea.sflag [#allocation4], 1
    %540 = vsyncpa %s539, 1

</llo_original>
